<compile_context>
chip_gen: v6e
topology: v6e:2x2x1
jax: 0.10.0
libtpu: 0.0.40
codegen_flags: <defaults>
</compile_context>

<pallas_src>
import jax
import jax.numpy as jnp
from jax.experimental import pallas as pl
from jax.experimental.pallas import tpu as pltpu


def _round_up(n, m):
    return ((n + m - 1) // m) * m


def _encoder_kernel(x_ref, w1_ref, b1_ref, w2_ref, b2_ref, o_ref):
    # Layer 1: x @ W1^T + b1  (W1 already transposed in the wrapper -> no in-kernel .T)
    h = jnp.dot(x_ref[...], w1_ref[...], preferred_element_type=jnp.float32)
    h = h + b1_ref[...]                         # (tb, L) f32 + (1, L) f32
    # leaky_relu(negative_slope=0.2): max(h, 0.2*h) == h for h>=0, 0.2*h for h<0
    h = jnp.maximum(h, 0.2 * h)
    # Layer 2: h @ W2^T + b2 (cast only the MXU operand; accumulation stays f32)
    y = jnp.dot(h.astype(w2_ref.dtype), w2_ref[...],
                preferred_element_type=jnp.float32)
    y = y + b2_ref[...]
    # tanh on the EUP, final store in o_ref.dtype (f32 or bf16)
    o_ref[...] = jnp.tanh(y).astype(o_ref.dtype)


def mnist_encoder_forward(x, w1, b1, w2, b2, *, block_b=8192, mxu_dtype=None,
                          out_dtype=jnp.float32):
    """Fused MNIST_Encoder forward.

    x : (B, C) float32
    w1: (L, C), b1: (L,)   -- PyTorch nn.Linear layout (out_features, in_features)
    w2: (L, L), b2: (L,)
    mxu_dtype: e.g. jnp.bfloat16 to feed the MXU bf16 inputs (recommended on v5e/v6e/v7x
               for this bandwidth-bound kernel); f32 accumulation + f32 elementwise kept.
    out_dtype: jnp.float32 (default) or jnp.bfloat16 to halve output writeback bytes.
    """
    B, C = x.shape
    L = w1.shape[0]

    # Layout plumbing done once in the wrapper: pre-transpose weights.
    w1t = jnp.asarray(w1).T                     # (C, L)
    w2t = jnp.asarray(w2).T                     # (L, L)
    b1_2d = jnp.asarray(b1).reshape(1, L).astype(jnp.float32)
    b2_2d = jnp.asarray(b2).reshape(1, L).astype(jnp.float32)

    if mxu_dtype is not None:
        x_in = x.astype(mxu_dtype)
        w1t = w1t.astype(mxu_dtype)
        w2t = w2t.astype(mxu_dtype)
    else:
        x_in = x.astype(jnp.float32)
        w1t = w1t.astype(jnp.float32)
        w2t = w2t.astype(jnp.float32)

    # Batch tile: multiple of 8 sublanes, capped by block_b, and small enough that the
    # grid has >= 2 steps (so "parallel" can shard across v7x's 2 TCs). No padding of x:
    # the ragged final block is masked by Pallas on the output side.
    tb = _round_up(min(block_b, max(pl.cdiv(B, 2), 8)), 8)
    grid = (pl.cdiv(B, tb),)

    out_itemsize = jnp.dtype(out_dtype).itemsize
    cost = pl.CostEstimate(
        flops=2 * B * (C * L + L * L),
        transcendentals=B * L,                              # tanh
        bytes_accessed=(B * C * x_in.dtype.itemsize         # x
                        + C * L * w1t.dtype.itemsize        # W1^T
                        + L * L * w2t.dtype.itemsize        # W2^T
                        + 2 * L * 4                         # biases (f32)
                        + B * L * out_itemsize),            # output
    )

    return pl.pallas_call(
        _encoder_kernel,
        out_shape=jax.ShapeDtypeStruct((B, L), out_dtype),
        grid_spec=pltpu.PrefetchScalarGridSpec(
            num_scalar_prefetch=0,
            grid=grid,
            in_specs=[
                pl.BlockSpec((tb, C), lambda i: (i, 0)),  # x: tiled over batch
                pl.BlockSpec((C, L), lambda i: (0, 0)),   # W1^T: VMEM-resident
                pl.BlockSpec((1, L), lambda i: (0, 0)),   # b1:   VMEM-resident
                pl.BlockSpec((L, L), lambda i: (0, 0)),   # W2^T: VMEM-resident
                pl.BlockSpec((1, L), lambda i: (0, 0)),   # b2:   VMEM-resident
            ],
            out_specs=pl.BlockSpec((tb, L), lambda i: (i, 0)),
        ),
        compiler_params=pltpu.CompilerParams(
            dimension_semantics=("parallel",),   # shards batch grid across v7x's 2 TCs
        ),
        cost_estimate=cost,
    )(x_in, w1t, b1_2d, w2t, b2_2d)


def _reference(x, w1, b1, w2, b2):
    h = x @ w1.T + b1
    h = jnp.where(h >= 0.0, h, 0.2 * h)
    y = h @ w2.T + b2
    return jnp.tanh(y)


if __name__ == "__main__":
    in_channels = 32
    latent_size = 16
    batch = 256

    key = jax.random.PRNGKey(0)
    kx, kw1, kb1, kw2, kb2 = jax.random.split(key, 5)

    x = jax.random.normal(kx, (batch, in_channels), dtype=jnp.float32)

    # nn.Linear-style uniform(-1/sqrt(fan_in), 1/sqrt(fan_in)) init.
    bound1 = 1.0 / jnp.sqrt(in_channels)
    w1 = jax.random.uniform(kw1, (latent_size, in_channels), jnp.float32, -bound1, bound1)
    b1 = jax.random.uniform(kb1, (latent_size,), jnp.float32, -bound1, bound1)
    bound2 = 1.0 / jnp.sqrt(latent_size)
    w2 = jax.random.uniform(kw2, (latent_size, latent_size), jnp.float32, -bound2, bound2)
    b2 = jax.random.uniform(kb2, (latent_size,), jnp.float32, -bound2, bound2)

    ref = _reference(x, w1, b1, w2, b2)

    # 1) f32 path, default block_b: B=256 -> tb=128 -> grid=(2,) (both TCs active on v7x).
    out = jax.block_until_ready(mnist_encoder_forward(x, w1, b1, w2, b2))
    assert out.shape == (batch, latent_size)
    assert jnp.allclose(out, ref, atol=1e-5, rtol=1e-5), "f32 kernel mismatch vs reference"

    # 2) Ragged batch (no padding, masked final block): B=100 -> tb=56 -> grid=(2,).
    xr = x[:100]
    out_r = jax.block_until_ready(mnist_encoder_forward(xr, w1, b1, w2, b2))
    assert out_r.shape == (100, latent_size)
    assert jnp.allclose(out_r, ref[:100], atol=1e-5, rtol=1e-5), "ragged-batch mismatch"

    # 3) bf16 MXU inputs (recommended on all generations incl. v5e) + bf16 output;
    #    accumulation and elementwise math stay f32.
    out_bf16 = jax.block_until_ready(
        mnist_encoder_forward(x, w1, b1, w2, b2, mxu_dtype=jnp.bfloat16,
                              out_dtype=jnp.bfloat16))
    assert out_bf16.dtype == jnp.bfloat16
    assert jnp.allclose(out_bf16.astype(jnp.float32), ref, atol=5e-2, rtol=5e-2), \
        "bf16 kernel mismatch"

    print("KERNEL_OK")
</pallas_src>

<mosaic_0001>
module attributes {stable_mosaic.version = 11 : i64} {
  func.func @_encoder_kernel(%arg0: i32, %arg1: memref<128x32xf32, #tpu.memory_space<vmem>>, %arg2: memref<32x16xf32, #tpu.memory_space<vmem>>, %arg3: memref<1x16xf32, #tpu.memory_space<vmem>>, %arg4: memref<16x16xf32, #tpu.memory_space<vmem>>, %arg5: memref<1x16xf32, #tpu.memory_space<vmem>>, %arg6: memref<128x16xf32, #tpu.memory_space<vmem>>) attributes {dimension_semantics = [#tpu.dimension_semantics<parallel>], iteration_bounds = array<i64: 2>, scalar_prefetch = 0 : i64, scratch_operands = 0 : i64, tpu.core_type = #tpu.core_type<tc>, window_params = [{transform_indices = @transform_0, window_bounds = array<i64: 128, 32>}, {pipeline_mode = #tpu.pipeline_mode<synchronous>, transform_indices = @transform_1, window_bounds = array<i64: 32, 16>}, {pipeline_mode = #tpu.pipeline_mode<synchronous>, transform_indices = @transform_2, window_bounds = array<i64: 1, 16>}, {pipeline_mode = #tpu.pipeline_mode<synchronous>, transform_indices = @transform_3, window_bounds = array<i64: 16, 16>}, {pipeline_mode = #tpu.pipeline_mode<synchronous>, transform_indices = @transform_4, window_bounds = array<i64: 1, 16>}, {transform_indices = @transform_5, window_bounds = array<i64: 128, 16>}]} {
    %c0 = arith.constant 0 : index
    %c0_0 = arith.constant 0 : index
    %0 = vector.load %arg1[%c0, %c0_0] : memref<128x32xf32, #tpu.memory_space<vmem>>, vector<128x32xf32>
    %c0_1 = arith.constant 0 : index
    %c0_2 = arith.constant 0 : index
    %1 = vector.load %arg2[%c0_1, %c0_2] : memref<32x16xf32, #tpu.memory_space<vmem>>, vector<32x16xf32>
    %cst = arith.constant dense<0.000000e+00> : vector<128x16xf32>
    %2 = tpu.matmul %0, %1, %cst {dimension_numbers = #tpu.dot_dimension_numbers<[1], [0], [0], [1], [0, 0, 1, 1], [], []>} : vector<128x32xf32>, vector<32x16xf32>, vector<128x16xf32> -> vector<128x16xf32>
    %c0_3 = arith.constant 0 : index
    %c0_4 = arith.constant 0 : index
    %3 = vector.load %arg3[%c0_3, %c0_4] : memref<1x16xf32, #tpu.memory_space<vmem>>, vector<1x16xf32>
    %4 = vector.broadcast %3 : vector<1x16xf32> to vector<128x16xf32>
    %5 = arith.addf %2, %4 : vector<128x16xf32>
    %cst_5 = arith.constant 2.000000e-01 : f32
    %6 = vector.broadcast %cst_5 : f32 to vector<128x16xf32>
    %7 = arith.mulf %6, %5 : vector<128x16xf32>
    %8 = arith.maximumf %5, %7 : vector<128x16xf32>
    %c0_6 = arith.constant 0 : index
    %c0_7 = arith.constant 0 : index
    %9 = vector.load %arg4[%c0_6, %c0_7] : memref<16x16xf32, #tpu.memory_space<vmem>>, vector<16x16xf32>
    %cst_8 = arith.constant dense<0.000000e+00> : vector<128x16xf32>
    %10 = tpu.matmul %8, %9, %cst_8 {dimension_numbers = #tpu.dot_dimension_numbers<[1], [0], [0], [1], [0, 0, 1, 1], [], []>} : vector<128x16xf32>, vector<16x16xf32>, vector<128x16xf32> -> vector<128x16xf32>
    %c0_9 = arith.constant 0 : index
    %c0_10 = arith.constant 0 : index
    %11 = vector.load %arg5[%c0_9, %c0_10] : memref<1x16xf32, #tpu.memory_space<vmem>>, vector<1x16xf32>
    %12 = vector.broadcast %11 : vector<1x16xf32> to vector<128x16xf32>
    %13 = arith.addf %10, %12 : vector<128x16xf32>
    %14 = math.tanh %13 : vector<128x16xf32>
    %c0_11 = arith.constant 0 : index
    %c0_12 = arith.constant 0 : index
    %15 = vector.load %arg6[%c0_11, %c0_12] : memref<128x16xf32, #tpu.memory_space<vmem>>, vector<128x16xf32>
    tpu.vector_store %arg6[%c0_11, %c0_12], %14 {strides = array<i32>} : memref<128x16xf32, #tpu.memory_space<vmem>>, vector<128x16xf32>,
    return
  }
  func.func @transform_0(%arg0: i32) -> (i32, i32) {
    %c0_i32 = arith.constant 0 : i32
    %c0_i32_0 = arith.constant 0 : i32
    return %arg0, %c0_i32 : i32, i32
  }
  func.func @transform_1(%arg0: i32) -> (i32, i32) {
    %c0_i32 = arith.constant 0 : i32
    %c0_i32_0 = arith.constant 0 : i32
    %c0_i32_1 = arith.constant 0 : i32
    return %c0_i32, %c0_i32_0 : i32, i32
  }
  func.func @transform_2(%arg0: i32) -> (i32, i32) {
    %c0_i32 = arith.constant 0 : i32
    %c0_i32_0 = arith.constant 0 : i32
    %c0_i32_1 = arith.constant 0 : i32
    return %c0_i32, %c0_i32_0 : i32, i32
  }
  func.func @transform_3(%arg0: i32) -> (i32, i32) {
    %c0_i32 = arith.constant 0 : i32
    %c0_i32_0 = arith.constant 0 : i32
    %c0_i32_1 = arith.constant 0 : i32
    return %c0_i32, %c0_i32_0 : i32, i32
  }
  func.func @transform_4(%arg0: i32) -> (i32, i32) {
    %c0_i32 = arith.constant 0 : i32
    %c0_i32_0 = arith.constant 0 : i32
    %c0_i32_1 = arith.constant 0 : i32
    return %c0_i32, %c0_i32_0 : i32, i32
  }
  func.func @transform_5(%arg0: i32) -> (i32, i32) {
    %c0_i32 = arith.constant 0 : i32
    %c0_i32_0 = arith.constant 0 : i32
    return %arg0, %c0_i32 : i32, i32
  }
}

</mosaic_0001>

<llo_original>
// kernel: tpu_custom_call.1
$region0: #{tpu_custom_call.1}
  #allocation0 [shape = 'u32[]', space=smem, size = 0x4, offset = 0x4, fixed_abs, tag = 'smem constant byte address 0x4 - core index']
  #allocation1 [shape = 'u32[144,128]{1,0:T(1,128)}', space=vmem, size = 0x12000, scoped, tag = 'internal scratch']
  %s0 = inlined_call_operand.vmem [shape: f32[256,32], index: 0, kind: input, shape index: {}]
  %s1 = inlined_call_operand.vmem [shape: f32[32,16], index: 1, kind: input, shape index: {}]
  %s2 = inlined_call_operand.vmem [shape: f32[1,16], index: 2, kind: input, shape index: {}]
  %s3 = inlined_call_operand.vmem [shape: f32[16,16], index: 3, kind: input, shape index: {}]
  %s4 = inlined_call_operand.vmem [shape: f32[1,16], index: 4, kind: input, shape index: {}]
  %s5 = inlined_call_operand.vmem [shape: f32[256,16], index: 5, kind: output, shape index: {}]
  %s6 = sld [smem:[#allocation0]]
  $region53: #{tpu_custom_call.1} parent=0
    _
  %s8 = ssub.s32 1, %s6
  %s9 = scalar_select 0, %s8, %s6
  loop: start=0, step=1, limit=4
  $region2: #{tpu_custom_call.1} parent=0 // loop_pre_header
    _
  $region3: #{tpu_custom_call.1} parent=0 // loop_header
    %s11 = sphi 0, %s15
    %p12 = scmp.ge.s32.totalorder %s11, 4
    %s21 = sphi 0, %s23
    %s24 = sphi 0, %s21
    %s25 = sphi 0, %s24
    %s41 = sphi 0, %s25
    %s45 = sphi 0, %s45
    %s47 = sphi 0, %s45
    %s48 = sphi 0, %s47
    %s62 = sphi 0, %s48
    %s66 = sphi 0, %s66
    %s68 = sphi 0, %s66
    %s69 = sphi 0, %s68
    %s83 = sphi 0, %s69
    %s87 = sphi 0, %s87
    %s89 = sphi 0, %s87
    %s90 = sphi 0, %s89
    %s104 = sphi 0, %s90
    %s108 = sphi 0, %s108
    %s110 = sphi 0, %s108
    %s111 = sphi 0, %s110
    %s125 = sphi 0, %s111
    %s131 = sphi 0, %s133
    %s134 = sphi 0, %s131
    %s135 = sphi 0, %s134
    %s151 = sphi 0, %s135
  $region4: #{tpu_custom_call.1} parent=0 // loop_header_branch
    %14 = sbr.rel (%p12) target = $region8
  $region5: #{tpu_custom_call.1} parent=0 // loop_body
    %s16 = ssub.s32 %s11, 1
    %s17 = ssub.s32 %s11, 2
    %s18 = sadd.s32 %s11, 1
    %s19 = ssub.s32 %s11, %s18
    %p20 = scmp.eq.s32.totalorder %s19, 0
    %s22 = sadd.s32 %s21, 1
    %s23 = scalar_select %p20, %s21, %s22
    %p26 = pneg %p20
    %p27 = scmp.eq.s32.totalorder %s11, 1
    %p28 = por %p26, %p27
    %p29 = scmp.ne.s32.totalorder %s21, %s24
    %p30 = scmp.eq.s32.totalorder %s11, 0
    %p31 = por %p29, %p30
    %p32 = scmp.ne.s32.totalorder %s21, %s24
    %p33 = scmp.eq.s32.totalorder %s16, 1
    %p34 = por %p32, %p33
    %p35 = scmp.ne.s32.totalorder %s24, %s25
    %p36 = scmp.eq.s32.totalorder %s16, 0
    %p37 = por %p35, %p36
    %p38 = scmp.ne.s32.totalorder %s24, %s25
    %p39 = scmp.eq.s32.totalorder %s17, 1
    %p40 = por %p38, %p39
    %p42 = scmp.ne.s32.totalorder %s25, %s41
    %p43 = scmp.eq.s32.totalorder %s17, 0
    %p44 = por %p42, %p43
    %s46 = sadd.s32 %s45, 1
    %p49 = scmp.eq.s32.totalorder %s11, 1
    %p50 = scmp.ne.s32.totalorder %s45, %s47
    %p51 = scmp.eq.s32.totalorder %s11, 0
    %p52 = por %p50, %p51
    %p53 = scmp.ne.s32.totalorder %s45, %s47
    %p54 = scmp.eq.s32.totalorder %s16, 1
    %p55 = por %p53, %p54
    %p56 = scmp.ne.s32.totalorder %s47, %s48
    %p57 = scmp.eq.s32.totalorder %s16, 0
    %p58 = por %p56, %p57
    %p59 = scmp.ne.s32.totalorder %s47, %s48
    %p60 = scmp.eq.s32.totalorder %s17, 1
    %p61 = por %p59, %p60
    %p63 = scmp.ne.s32.totalorder %s48, %s62
    %p64 = scmp.eq.s32.totalorder %s17, 0
    %p65 = por %p63, %p64
    %s67 = sadd.s32 %s66, 1
    %p70 = scmp.eq.s32.totalorder %s11, 1
    %p71 = scmp.ne.s32.totalorder %s66, %s68
    %p72 = scmp.eq.s32.totalorder %s11, 0
    %p73 = por %p71, %p72
    %p74 = scmp.ne.s32.totalorder %s66, %s68
    %p75 = scmp.eq.s32.totalorder %s16, 1
    %p76 = por %p74, %p75
    %p77 = scmp.ne.s32.totalorder %s68, %s69
    %p78 = scmp.eq.s32.totalorder %s16, 0
    %p79 = por %p77, %p78
    %p80 = scmp.ne.s32.totalorder %s68, %s69
    %p81 = scmp.eq.s32.totalorder %s17, 1
    %p82 = por %p80, %p81
    %p84 = scmp.ne.s32.totalorder %s69, %s83
    %p85 = scmp.eq.s32.totalorder %s17, 0
    %p86 = por %p84, %p85
    %s88 = sadd.s32 %s87, 1
    %p91 = scmp.eq.s32.totalorder %s11, 1
    %p92 = scmp.ne.s32.totalorder %s87, %s89
    %p93 = scmp.eq.s32.totalorder %s11, 0
    %p94 = por %p92, %p93
    %p95 = scmp.ne.s32.totalorder %s87, %s89
    %p96 = scmp.eq.s32.totalorder %s16, 1
    %p97 = por %p95, %p96
    %p98 = scmp.ne.s32.totalorder %s89, %s90
    %p99 = scmp.eq.s32.totalorder %s16, 0
    %p100 = por %p98, %p99
    %p101 = scmp.ne.s32.totalorder %s89, %s90
    %p102 = scmp.eq.s32.totalorder %s17, 1
    %p103 = por %p101, %p102
    %p105 = scmp.ne.s32.totalorder %s90, %s104
    %p106 = scmp.eq.s32.totalorder %s17, 0
    %p107 = por %p105, %p106
    %s109 = sadd.s32 %s108, 1
    %p112 = scmp.eq.s32.totalorder %s11, 1
    %p113 = scmp.ne.s32.totalorder %s108, %s110
    %p114 = scmp.eq.s32.totalorder %s11, 0
    %p115 = por %p113, %p114
    %p116 = scmp.ne.s32.totalorder %s108, %s110
    %p117 = scmp.eq.s32.totalorder %s16, 1
    %p118 = por %p116, %p117
    %p119 = scmp.ne.s32.totalorder %s110, %s111
    %p120 = scmp.eq.s32.totalorder %s16, 0
    %p121 = por %p119, %p120
    %p122 = scmp.ne.s32.totalorder %s110, %s111
    %p123 = scmp.eq.s32.totalorder %s17, 1
    %p124 = por %p122, %p123
    %p126 = scmp.ne.s32.totalorder %s111, %s125
    %p127 = scmp.eq.s32.totalorder %s17, 0
    %p128 = por %p126, %p127
    %s129 = ssub.s32 %s11, %s18
    %p130 = scmp.eq.s32.totalorder %s129, 0
    %s132 = sadd.s32 %s131, 1
    %s133 = scalar_select %p130, %s131, %s132
    %p136 = pneg %p130
    %p137 = scmp.eq.s32.totalorder %s11, 1
    %p138 = por %p136, %p137
    %p139 = scmp.ne.s32.totalorder %s131, %s134
    %p140 = scmp.eq.s32.totalorder %s11, 0
    %p141 = por %p139, %p140
    %p142 = scmp.ne.s32.totalorder %s131, %s134
    %p143 = scmp.eq.s32.totalorder %s16, 1
    %p144 = por %p142, %p143
    %p145 = scmp.ne.s32.totalorder %s134, %s135
    %p146 = scmp.eq.s32.totalorder %s16, 0
    %p147 = por %p145, %p146
    %p148 = scmp.ne.s32.totalorder %s134, %s135
    %p149 = scmp.eq.s32.totalorder %s17, 1
    %p150 = por %p148, %p149
    %p152 = scmp.ne.s32.totalorder %s135, %s151
    %p153 = scmp.eq.s32.totalorder %s17, 0
    %p154 = por %p152, %p153
    %p155 = scmp.le.s32.totalorder 1, %s11
    %p156 = scmp.lt.s32.totalorder %s11, 3
    %p157 = pnand %p155, %p156
    %p158 = pneg %p157
    // Predicated region
    $region9: #{tpu_custom_call.1} parent=5 // pred_check
      _
    $region10: #{tpu_custom_call.1} parent=5 // pred_check_branch
      %160 = sbr.rel (%p157) target = $region12
    $region11: #{tpu_custom_call.1} parent=5 // pred_region
      %s161 = ssub.s32 %s11, 1
      // Predicated region
      $region13: #{tpu_custom_call.1} parent=11 // pred_check
        %p162 = pneg %p58
      $region14: #{tpu_custom_call.1} parent=11 // pred_check_branch
        %164 = sbr.rel (%p162) target = $region16
      $region15: #{tpu_custom_call.1} parent=11 // pred_region
        _
      $region16: #{tpu_custom_call.1} parent=11 // pred_fallthru
        _
      // Predicated region
      $region17: #{tpu_custom_call.1} parent=11 // pred_check
        %p165 = pneg %p79
      $region18: #{tpu_custom_call.1} parent=11 // pred_check_branch
        %167 = sbr.rel (%p165) target = $region20
      $region19: #{tpu_custom_call.1} parent=11 // pred_region
        _
      $region20: #{tpu_custom_call.1} parent=11 // pred_fallthru
        _
      // Predicated region
      $region21: #{tpu_custom_call.1} parent=11 // pred_check
        %p168 = pneg %p100
      $region22: #{tpu_custom_call.1} parent=11 // pred_check_branch
        %170 = sbr.rel (%p168) target = $region24
      $region23: #{tpu_custom_call.1} parent=11 // pred_region
        _
      $region24: #{tpu_custom_call.1} parent=11 // pred_fallthru
        _
      // Predicated region
      $region25: #{tpu_custom_call.1} parent=11 // pred_check
        %p171 = pneg %p121
      $region26: #{tpu_custom_call.1} parent=11 // pred_check_branch
        %173 = sbr.rel (%p171) target = $region28
      $region27: #{tpu_custom_call.1} parent=11 // pred_region
        _
      $region28: #{tpu_custom_call.1} parent=11 // pred_fallthru
        _
    $region12: #{tpu_custom_call.1} parent=5 // pred_fallthru
      _
    %p174 = scmp.lt.s32.totalorder %s11, 2
    // Predicated region
    $region29: #{tpu_custom_call.1} parent=5 // pred_check
      %p175 = pneg %p174
    $region30: #{tpu_custom_call.1} parent=5 // pred_check_branch
      %177 = sbr.rel (%p175) target = $region32
    $region31: #{tpu_custom_call.1} parent=5 // pred_region
      // Predicated region
      $region33: #{tpu_custom_call.1} parent=31 // pred_check
        %p178 = pneg %p31
      $region34: #{tpu_custom_call.1} parent=31 // pred_check_branch
        %180 = sbr.rel (%p178) target = $region36
      $region35: #{tpu_custom_call.1} parent=31 // pred_region
        %s181 = smul.u32 16, %s11
        %p182 = scmp.lt.s32.totalorder %s181, 31
        %s183 = scalar_select %p182, %s181, 31
        %s184 = smul.addr %s183, 8
        %s185 = scalar_lea.vmem %s0, %s184
        %s186 = smul.u32 16, %s11
      $region36: #{tpu_custom_call.1} parent=31 // pred_fallthru
        _
    $region32: #{tpu_custom_call.1} parent=5 // pred_fallthru
      _
    %p187 = scmp.le.s32.totalorder 1, %s11
    %p188 = scmp.lt.s32.totalorder %s11, 3
    %p189 = pnand %p187, %p188
    %p190 = pneg %p189
    // Predicated region
    $region37: #{tpu_custom_call.1} parent=5 // pred_check
      _
    $region38: #{tpu_custom_call.1} parent=5 // pred_check_branch
      %192 = sbr.rel (%p189) target = $region40
    $region39: #{tpu_custom_call.1} parent=5 // pred_region
      %s193 = ssub.s32 %s11, 1
      %s194 = smul.u32 16, %s16
      %p195 = scmp.lt.s32.totalorder %s194, 31
      %s196 = scalar_select %p195, %s194, 31
      %s197 = smul.addr %s196, 8
      %s198 = scalar_lea.vmem %s0, %s197
      %p199 = pneg %p37
      %p200 = pneg %p34
      %p201 = pneg %p58
      %p202 = pneg %p55
      %p203 = pneg %p79
      %p204 = pneg %p76
      %p205 = pneg %p100
      %p206 = pneg %p97
      %p207 = pneg %p121
      %p208 = pneg %p118
      %p209 = pneg %p147
      %p210 = pneg %p144
      %s211 = smul.u32 16, %s16
      %p212 = scmp.lt.s32.totalorder %s211, 31
      %s213 = scalar_select %p212, %s211, 31
      %s214 = smul.addr %s213, 8
      %s215 = scalar_lea.vmem %s5, %s214
      %s216 = smul.u32 16, %s16
      %p217 = scmp.lt.s32.totalorder %s216, 31
      %s218 = scalar_select %p217, %s216, 31
      %s219 = smul.addr %s218, 8
      %s220 = scalar_lea.vmem %s0, %s219
      %s221 = smul.u32 16, %s16
      %s222 = smul.u32 16, %s16
      %p223 = scmp.lt.s32.totalorder %s222, 31
      %s224 = scalar_select %p223, %s222, 31
      %s225 = smul.addr %s224, 8
      %s226 = scalar_lea.vmem %s5, %s225
      %s227 = smul.u32 16, %s16
      %v228 = vld [vmem:[%s220] sm:$0xff]
      %v229 = vld [vmem:[%s220 + $0x8] sm:$0xff]
      %v230 = vld [vmem:[%s220 + $0x10] sm:$0xff]
      %v231 = vld [vmem:[%s220 + $0x18] sm:$0xff]
      %v232 = vld [vmem:[%s220 + $0x20] sm:$0xff]
      %v233 = vld [vmem:[%s220 + $0x28] sm:$0xff]
      %v234 = vld [vmem:[%s220 + $0x30] sm:$0xff]
      %v235 = vld [vmem:[%s220 + $0x38] sm:$0xff]
      %v236 = vld [vmem:[%s220 + $0x40] sm:$0xff]
      %v237 = vld [vmem:[%s220 + $0x48] sm:$0xff]
      %v238 = vld [vmem:[%s220 + $0x50] sm:$0xff]
      %v239 = vld [vmem:[%s220 + $0x58] sm:$0xff]
      %v240 = vld [vmem:[%s220 + $0x60] sm:$0xff]
      %v241 = vld [vmem:[%s220 + $0x68] sm:$0xff]
      %v242 = vld [vmem:[%s220 + $0x70] sm:$0xff]
      %v243 = vld [vmem:[%s220 + $0x78] sm:$0xff]
      %v244 = vld [vmem:[%s1] sm:$0xff]
      %v245 = vld [vmem:[%s1 + $0x8] sm:$0xff]
      %v246 = vld [vmem:[%s1 + $0x10] sm:$0xff]
      %v247 = vld [vmem:[%s1 + $0x18] sm:$0xff]
      %v248 = vld [vmem:[%s2] sm:$0x1]
      %v250 = vlaneseq
      %v251 = vshrl.u32 %v250, 7
      %v252 = vsub.s32 0, %v251
      %v253 = vrot.slane %v248, %v252
      %vm255 = vcmask 261120
      %v257 = vsel %vm255, %v228, 0
      %v260 = vsel %vm255, %v229, 0
      %v263 = vsel %vm255, %v230, 0
      %v266 = vsel %vm255, %v231, 0
      %v269 = vsel %vm255, %v232, 0
      %v272 = vsel %vm255, %v233, 0
      %v275 = vsel %vm255, %v234, 0
      %v278 = vsel %vm255, %v235, 0
      %v281 = vsel %vm255, %v236, 0
      %v284 = vsel %vm255, %v237, 0
      %v287 = vsel %vm255, %v238, 0
      %v290 = vsel %vm255, %v239, 0
      %v293 = vsel %vm255, %v240, 0
      %v296 = vsel %vm255, %v241, 0
      %v299 = vsel %vm255, %v242, 0
      %v302 = vsel %vm255, %v243, 0
      %304 = vmatprep.subr.mxu0 0.0
      %305 = vmatpush1.msra.mxu0 0.0
      %306 = vmatprep.subr.mxu0 0.0
      %307 = vmatpush1.msra.mxu0 0.0
      %308 = vmatprep.subr.mxu0 0.0
      %309 = vmatpush1.msra.mxu0 0.0
      %310 = vmatprep.subr.mxu0 0.0
      %311 = vmatpush1.msra.mxu0 0.0
      %312 = vmatprep.subr.mxu0 0.0
      %313 = vmatpush1.msra.mxu0 0.0
      %314 = vmatprep.subr.mxu0 0.0
      %315 = vmatpush1.msra.mxu0 0.0
      %316 = vmatprep.subr.mxu0 0.0
      %317 = vmatpush1.msra.mxu0 0.0
      %318 = vmatprep.subr.mxu0 0.0
      %319 = vmatpush1.msra.mxu0 0.0
      %320 = vmatprep.subr.mxu0 0.0
      %321 = vmatpush1.msra.mxu0 0.0
      %322 = vmatprep.subr.mxu0 0.0
      %323 = vmatpush1.msra.mxu0 0.0
      %324 = vmatprep.subr.mxu0 0.0
      %325 = vmatpush1.msra.mxu0 0.0
      %326 = vmatprep.subr.mxu0 0.0
      %327 = vmatpush1.msra.mxu0 0.0
      %328 = vmatprep.subr.mxu0 0.0
      %329 = vmatpush1.msra.mxu0 %v247
      %330 = vmatprep.subr.mxu0 0.0
      %331 = vmatpush1.msra.mxu0 %v246
      %332 = vmatprep.subr.mxu0 0.0
      %333 = vmatpush1.msra.mxu0 %v245
      %334 = vmatprep.subr.mxu0 0.0
      %335 = vmatpush1.msra.mxu0 %v244
      %336 = vmatprep.subr.mxu0 0.0
      %337 = vmatpush2.msra.mxu0 0.0
      %338 = vmatprep.subr.mxu0 0.0
      %339 = vmatpush2.msra.mxu0 0.0
      %340 = vmatprep.subr.mxu0 0.0
      %341 = vmatpush2.msra.mxu0 0.0
      %342 = vmatprep.subr.mxu0 0.0
      %343 = vmatpush2.msra.mxu0 0.0
      %344 = vmatprep.subr.mxu0 0.0
      %345 = vmatpush2.msra.mxu0 0.0
      %346 = vmatprep.subr.mxu0 0.0
      %347 = vmatpush2.msra.mxu0 0.0
      %348 = vmatprep.subr.mxu0 0.0
      %349 = vmatpush2.msra.mxu0 0.0
      %350 = vmatprep.subr.mxu0 0.0
      %351 = vmatpush2.msra.mxu0 0.0
      %352 = vmatprep.subr.mxu0 0.0
      %353 = vmatpush2.msra.mxu0 0.0
      %354 = vmatprep.subr.mxu0 0.0
      %355 = vmatpush2.msra.mxu0 0.0
      %356 = vmatprep.subr.mxu0 0.0
      %357 = vmatpush2.msra.mxu0 0.0
      %358 = vmatprep.subr.mxu0 0.0
      %359 = vmatpush2.msra.mxu0 0.0
      %360 = vmatprep.subr.mxu0 0.0
      %361 = vmatpush2.msra.mxu0 0.0
      %362 = vmatprep.subr.mxu0 0.0
      %363 = vmatpush2.msra.mxu0 0.0
      %364 = vmatprep.subr.mxu0 0.0
      %365 = vmatpush2.msra.mxu0 0.0
      %366 = vmatprep.subr.mxu0 0.0
      %367 = vmatpush2.msra.mxu0 0.0
      %368 = vmatprep.mubr.f32.mxu0 0.0
      %369 = vmatmul.mubr.f32.gmra.mxu0 %v257
      %v370 = vpop.f32.mrf.mxu0
      %v371 = vadd.f32 %v253, %v370
      %v372 = vpop.f32.mrf.mxu0
      %373 = vmatprep.mubr.f32.mxu0 0.0
      %374 = vmatmul.mubr.f32.gmra.mxu0 %v260
      %v375 = vpop.f32.mrf.mxu0
      %v376 = vadd.f32 %v253, %v375
      %v377 = vpop.f32.mrf.mxu0
      %378 = vmatprep.mubr.f32.mxu0 0.0
      %379 = vmatmul.mubr.f32.gmra.mxu0 %v263
      %v380 = vpop.f32.mrf.mxu0
      %v381 = vadd.f32 %v253, %v380
      %v382 = vpop.f32.mrf.mxu0
      %383 = vmatprep.mubr.f32.mxu0 0.0
      %384 = vmatmul.mubr.f32.gmra.mxu0 %v266
      %v385 = vpop.f32.mrf.mxu0
      %v386 = vadd.f32 %v253, %v385
      %v387 = vpop.f32.mrf.mxu0
      %388 = vmatprep.mubr.f32.mxu0 0.0
      %389 = vmatmul.mubr.f32.gmra.mxu0 %v269
      %v390 = vpop.f32.mrf.mxu0
      %v391 = vadd.f32 %v253, %v390
      %v392 = vpop.f32.mrf.mxu0
      %393 = vmatprep.mubr.f32.mxu0 0.0
      %394 = vmatmul.mubr.f32.gmra.mxu0 %v272
      %v395 = vpop.f32.mrf.mxu0
      %v396 = vadd.f32 %v253, %v395
      %v397 = vpop.f32.mrf.mxu0
      %398 = vmatprep.mubr.f32.mxu0 0.0
      %399 = vmatmul.mubr.f32.gmra.mxu0 %v275
      %v400 = vpop.f32.mrf.mxu0
      %v401 = vadd.f32 %v253, %v400
      %v402 = vpop.f32.mrf.mxu0
      %403 = vmatprep.mubr.f32.mxu0 0.0
      %404 = vmatmul.mubr.f32.gmra.mxu0 %v278
      %v405 = vpop.f32.mrf.mxu0
      %v406 = vadd.f32 %v253, %v405
      %v407 = vpop.f32.mrf.mxu0
      %408 = vmatprep.mubr.f32.mxu0 0.0
      %409 = vmatmul.mubr.f32.gmra.mxu0 %v281
      %v410 = vpop.f32.mrf.mxu0
      %v411 = vadd.f32 %v253, %v410
      %v412 = vpop.f32.mrf.mxu0
      %413 = vmatprep.mubr.f32.mxu0 0.0
      %414 = vmatmul.mubr.f32.gmra.mxu0 %v284
      %v415 = vpop.f32.mrf.mxu0
      %v416 = vadd.f32 %v253, %v415
      %v417 = vpop.f32.mrf.mxu0
      %418 = vmatprep.mubr.f32.mxu0 0.0
      %419 = vmatmul.mubr.f32.gmra.mxu0 %v287
      %v420 = vpop.f32.mrf.mxu0
      %v421 = vadd.f32 %v253, %v420
      %v422 = vpop.f32.mrf.mxu0
      %423 = vmatprep.mubr.f32.mxu0 0.0
      %424 = vmatmul.mubr.f32.gmra.mxu0 %v290
      %v425 = vpop.f32.mrf.mxu0
      %v426 = vadd.f32 %v253, %v425
      %v427 = vpop.f32.mrf.mxu0
      %428 = vmatprep.mubr.f32.mxu0 0.0
      %429 = vmatmul.mubr.f32.gmra.mxu0 %v293
      %v430 = vpop.f32.mrf.mxu0
      %v431 = vadd.f32 %v253, %v430
      %v432 = vpop.f32.mrf.mxu0
      %433 = vmatprep.mubr.f32.mxu0 0.0
      %434 = vmatmul.mubr.f32.gmra.mxu0 %v296
      %v435 = vpop.f32.mrf.mxu0
      %v436 = vadd.f32 %v253, %v435
      %v437 = vpop.f32.mrf.mxu0
      %438 = vmatprep.mubr.f32.mxu0 0.0
      %439 = vmatmul.mubr.f32.gmra.mxu0 %v299
      %v440 = vpop.f32.mrf.mxu0
      %v441 = vadd.f32 %v253, %v440
      %v442 = vpop.f32.mrf.mxu0
      %443 = vmatprep.mubr.f32.mxu0 0.0
      %444 = vmatmul.mubr.f32.gmra.mxu0 %v302
      %v445 = vpop.f32.mrf.mxu0
      %v446 = vadd.f32 %v253, %v445
      %v447 = vpop.f32.mrf.mxu0
      %448 = vdwg.mxu0
      %v449 = vmul.f32 %v371, 0.2
      %v450 = vmul.f32 %v376, 0.2
      %v451 = vmul.f32 %v381, 0.2
      %v452 = vmul.f32 %v386, 0.2
      %v453 = vmul.f32 %v391, 0.2
      %v454 = vmul.f32 %v396, 0.2
      %v455 = vmul.f32 %v401, 0.2
      %v456 = vmul.f32 %v406, 0.2
      %v457 = vmul.f32 %v411, 0.2
      %v458 = vmul.f32 %v416, 0.2
      %v459 = vmul.f32 %v421, 0.2
      %v460 = vmul.f32 %v426, 0.2
      %v461 = vmul.f32 %v431, 0.2
      %v462 = vmul.f32 %v436, 0.2
      %v463 = vmul.f32 %v441, 0.2
      %v464 = vmul.f32 %v446, 0.2
      %v465 = vmax.f32 %v371, %v449
      %v466 = vmax.f32 %v376, %v450
      %v467 = vmax.f32 %v381, %v451
      %v468 = vmax.f32 %v386, %v452
      %v469 = vmax.f32 %v391, %v453
      %v470 = vmax.f32 %v396, %v454
      %v471 = vmax.f32 %v401, %v455
      %v472 = vmax.f32 %v406, %v456
      %v473 = vmax.f32 %v411, %v457
      %v474 = vmax.f32 %v416, %v458
      %v475 = vmax.f32 %v421, %v459
      %v476 = vmax.f32 %v426, %v460
      %v477 = vmax.f32 %v431, %v461
      %v478 = vmax.f32 %v436, %v462
      %v479 = vmax.f32 %v441, %v463
      %v480 = vmax.f32 %v446, %v464
      %v481 = vld [vmem:[%s3] sm:$0xff]
      %v482 = vld [vmem:[%s3 + $0x8] sm:$0xff]
      %v483 = vld [vmem:[%s4] sm:$0x1]
      %v485 = vlaneseq
      %v486 = vshrl.u32 %v485, 7
      %v487 = vsub.s32 0, %v486
      %v488 = vrot.slane %v483, %v487
      %vm490 = vcmask 130048
      %v492 = vsel %vm490, %v465, 0
      %v495 = vsel %vm490, %v466, 0
      %v498 = vsel %vm490, %v467, 0
      %v501 = vsel %vm490, %v468, 0
      %v504 = vsel %vm490, %v469, 0
      %v507 = vsel %vm490, %v470, 0
      %v510 = vsel %vm490, %v471, 0
      %v513 = vsel %vm490, %v472, 0
      %v516 = vsel %vm490, %v473, 0
      %v519 = vsel %vm490, %v474, 0
      %v522 = vsel %vm490, %v475, 0
      %v525 = vsel %vm490, %v476, 0
      %v528 = vsel %vm490, %v477, 0
      %v531 = vsel %vm490, %v478, 0
      %v534 = vsel %vm490, %v479, 0
      %v537 = vsel %vm490, %v480, 0
      %539 = vmatprep.subr.mxu0 0.0
      %540 = vmatpush1.msra.mxu0 0.0
      %541 = vmatprep.subr.mxu0 0.0
      %542 = vmatpush1.msra.mxu0 0.0
      %543 = vmatprep.subr.mxu0 0.0
      %544 = vmatpush1.msra.mxu0 0.0
      %545 = vmatprep.subr.mxu0 0.0
      %546 = vmatpush1.msra.mxu0 0.0
      %547 = vmatprep.subr.mxu0 0.0
      %548 = vmatpush1.msra.mxu0 0.0
      %549 = vmatprep.subr.mxu0 0.0
      %550 = vmatpush1.msra.mxu0 0.0
      %551 = vmatprep.subr.mxu0 0.0
      %552 = vmatpush1.msra.mxu0 0.0
      %553 = vmatprep.subr.mxu0 0.0
      %554 = vmatpush1.msra.mxu0 0.0
      %555 = vmatprep.subr.mxu0 0.0
      %556 = vmatpush1.msra.mxu0 0.0
      %557 = vmatprep.subr.mxu0 0.0
      %558 = vmatpush1.msra.mxu0 0.0
      %559 = vmatprep.subr.mxu0 0.0
      %560 = vmatpush1.msra.mxu0 0.0
      %561 = vmatprep.subr.mxu0 0.0
      %562 = vmatpush1.msra.mxu0 0.0
      %563 = vmatprep.subr.mxu0 0.0
      %564 = vmatpush1.msra.mxu0 0.0
      %565 = vmatprep.subr.mxu0 0.0
      %566 = vmatpush1.msra.mxu0 0.0
      %567 = vmatprep.subr.mxu0 0.0
      %568 = vmatpush1.msra.mxu0 %v482
      %569 = vmatprep.subr.mxu0 0.0
      %570 = vmatpush1.msra.mxu0 %v481
      %571 = vmatprep.subr.mxu0 0.0
      %572 = vmatpush2.msra.mxu0 0.0
      %573 = vmatprep.subr.mxu0 0.0
      %574 = vmatpush2.msra.mxu0 0.0
      %575 = vmatprep.subr.mxu0 0.0
      %576 = vmatpush2.msra.mxu0 0.0
      %577 = vmatprep.subr.mxu0 0.0
      %578 = vmatpush2.msra.mxu0 0.0
      %579 = vmatprep.subr.mxu0 0.0
      %580 = vmatpush2.msra.mxu0 0.0
      %581 = vmatprep.subr.mxu0 0.0
      %582 = vmatpush2.msra.mxu0 0.0
      %583 = vmatprep.subr.mxu0 0.0
      %584 = vmatpush2.msra.mxu0 0.0
      %585 = vmatprep.subr.mxu0 0.0
      %586 = vmatpush2.msra.mxu0 0.0
      %587 = vmatprep.subr.mxu0 0.0
      %588 = vmatpush2.msra.mxu0 0.0
      %589 = vmatprep.subr.mxu0 0.0
      %590 = vmatpush2.msra.mxu0 0.0
      %591 = vmatprep.subr.mxu0 0.0
      %592 = vmatpush2.msra.mxu0 0.0
      %593 = vmatprep.subr.mxu0 0.0
      %594 = vmatpush2.msra.mxu0 0.0
      %595 = vmatprep.subr.mxu0 0.0
      %596 = vmatpush2.msra.mxu0 0.0
      %597 = vmatprep.subr.mxu0 0.0
      %598 = vmatpush2.msra.mxu0 0.0
      %599 = vmatprep.subr.mxu0 0.0
      %600 = vmatpush2.msra.mxu0 0.0
      %601 = vmatprep.subr.mxu0 0.0
      %602 = vmatpush2.msra.mxu0 0.0
      %603 = vmatprep.mubr.f32.mxu0 0.0
      %604 = vmatmul.mubr.f32.gmra.mxu0 %v492
      %v605 = vpop.f32.mrf.mxu0
      %v606 = vadd.f32 %v488, %v605
      %v607 = vpop.f32.mrf.mxu0
      %608 = vmatprep.mubr.f32.mxu0 0.0
      %609 = vmatmul.mubr.f32.gmra.mxu0 %v495
      %v610 = vpop.f32.mrf.mxu0
      %v611 = vadd.f32 %v488, %v610
      %v612 = vpop.f32.mrf.mxu0
      %613 = vmatprep.mubr.f32.mxu0 0.0
      %614 = vmatmul.mubr.f32.gmra.mxu0 %v498
      %v615 = vpop.f32.mrf.mxu0
      %v616 = vadd.f32 %v488, %v615
      %v617 = vpop.f32.mrf.mxu0
      %618 = vmatprep.mubr.f32.mxu0 0.0
      %619 = vmatmul.mubr.f32.gmra.mxu0 %v501
      %v620 = vpop.f32.mrf.mxu0
      %v621 = vadd.f32 %v488, %v620
      %v622 = vpop.f32.mrf.mxu0
      %623 = vmatprep.mubr.f32.mxu0 0.0
      %624 = vmatmul.mubr.f32.gmra.mxu0 %v504
      %v625 = vpop.f32.mrf.mxu0
      %v626 = vadd.f32 %v488, %v625
      %v627 = vpop.f32.mrf.mxu0
      %628 = vmatprep.mubr.f32.mxu0 0.0
      %629 = vmatmul.mubr.f32.gmra.mxu0 %v507
      %v630 = vpop.f32.mrf.mxu0
      %v631 = vadd.f32 %v488, %v630
      %v632 = vpop.f32.mrf.mxu0
      %633 = vmatprep.mubr.f32.mxu0 0.0
      %634 = vmatmul.mubr.f32.gmra.mxu0 %v510
      %v635 = vpop.f32.mrf.mxu0
      %v636 = vadd.f32 %v488, %v635
      %v637 = vpop.f32.mrf.mxu0
      %638 = vmatprep.mubr.f32.mxu0 0.0
      %639 = vmatmul.mubr.f32.gmra.mxu0 %v513
      %v640 = vpop.f32.mrf.mxu0
      %v641 = vadd.f32 %v488, %v640
      %v642 = vpop.f32.mrf.mxu0
      %643 = vmatprep.mubr.f32.mxu0 0.0
      %644 = vmatmul.mubr.f32.gmra.mxu0 %v516
      %v645 = vpop.f32.mrf.mxu0
      %v646 = vadd.f32 %v488, %v645
      %v647 = vpop.f32.mrf.mxu0
      %648 = vmatprep.mubr.f32.mxu0 0.0
      %649 = vmatmul.mubr.f32.gmra.mxu0 %v519
      %v650 = vpop.f32.mrf.mxu0
      %v651 = vadd.f32 %v488, %v650
      %v652 = vpop.f32.mrf.mxu0
      %653 = vmatprep.mubr.f32.mxu0 0.0
      %654 = vmatmul.mubr.f32.gmra.mxu0 %v522
      %v655 = vpop.f32.mrf.mxu0
      %v656 = vadd.f32 %v488, %v655
      %v657 = vpop.f32.mrf.mxu0
      %658 = vmatprep.mubr.f32.mxu0 0.0
      %659 = vmatmul.mubr.f32.gmra.mxu0 %v525
      %v660 = vpop.f32.mrf.mxu0
      %v661 = vadd.f32 %v488, %v660
      %v662 = vpop.f32.mrf.mxu0
      %663 = vmatprep.mubr.f32.mxu0 0.0
      %664 = vmatmul.mubr.f32.gmra.mxu0 %v528
      %v665 = vpop.f32.mrf.mxu0
      %v666 = vadd.f32 %v488, %v665
      %v667 = vpop.f32.mrf.mxu0
      %668 = vmatprep.mubr.f32.mxu0 0.0
      %669 = vmatmul.mubr.f32.gmra.mxu0 %v531
      %v670 = vpop.f32.mrf.mxu0
      %v671 = vadd.f32 %v488, %v670
      %v672 = vpop.f32.mrf.mxu0
      %673 = vmatprep.mubr.f32.mxu0 0.0
      %674 = vmatmul.mubr.f32.gmra.mxu0 %v534
      %v675 = vpop.f32.mrf.mxu0
      %v676 = vadd.f32 %v488, %v675
      %v677 = vpop.f32.mrf.mxu0
      %678 = vmatprep.mubr.f32.mxu0 0.0
      %679 = vmatmul.mubr.f32.gmra.mxu0 %v537
      %v680 = vpop.f32.mrf.mxu0
      %v681 = vadd.f32 %v488, %v680
      %v682 = vpop.f32.mrf.mxu0
      %683 = vdwg.mxu0
      %v684 = vtanh.pop %v606
      %v685 = vtanh.pop %v611
      %v686 = vtanh.pop %v616
      %v687 = vtanh.pop %v621
      %v688 = vtanh.pop %v626
      %v689 = vtanh.pop %v631
      %v690 = vtanh.pop %v636
      %v691 = vtanh.pop %v641
      %v692 = vtanh.pop %v646
      %v693 = vtanh.pop %v651
      %v694 = vtanh.pop %v656
      %v695 = vtanh.pop %v661
      %v696 = vtanh.pop %v666
      %v697 = vtanh.pop %v671
      %v698 = vtanh.pop %v676
      %v699 = vtanh.pop %v681
      %700 = vst.msk [vmem:[%s226] sm:$0xff] %vm490, %v684
      %701 = vst.msk [vmem:[%s226 + $0x8] sm:$0xff] %vm490, %v685
      %702 = vst.msk [vmem:[%s226 + $0x10] sm:$0xff] %vm490, %v686
      %703 = vst.msk [vmem:[%s226 + $0x18] sm:$0xff] %vm490, %v687
      %704 = vst.msk [vmem:[%s226 + $0x20] sm:$0xff] %vm490, %v688
      %705 = vst.msk [vmem:[%s226 + $0x28] sm:$0xff] %vm490, %v689
      %706 = vst.msk [vmem:[%s226 + $0x30] sm:$0xff] %vm490, %v690
      %707 = vst.msk [vmem:[%s226 + $0x38] sm:$0xff] %vm490, %v691
      %708 = vst.msk [vmem:[%s226 + $0x40] sm:$0xff] %vm490, %v692
      %709 = vst.msk [vmem:[%s226 + $0x48] sm:$0xff] %vm490, %v693
      %710 = vst.msk [vmem:[%s226 + $0x50] sm:$0xff] %vm490, %v694
      %711 = vst.msk [vmem:[%s226 + $0x58] sm:$0xff] %vm490, %v695
      %712 = vst.msk [vmem:[%s226 + $0x60] sm:$0xff] %vm490, %v696
      %713 = vst.msk [vmem:[%s226 + $0x68] sm:$0xff] %vm490, %v697
      %714 = vst.msk [vmem:[%s226 + $0x70] sm:$0xff] %vm490, %v698
      %715 = vst.msk [vmem:[%s226 + $0x78] sm:$0xff] %vm490, %v699
      %s716 = smul.u32 16, %s16
      %p717 = scmp.lt.s32.totalorder %s716, 31
      %s718 = scalar_select %p717, %s716, 31
      %s719 = smul.addr %s718, 8
      %s720 = scalar_lea.vmem %s5, %s719
      // Predicated region
      $region41: #{tpu_custom_call.1} parent=39 // pred_check
        %p721 = pneg %p144
      $region42: #{tpu_custom_call.1} parent=39 // pred_check_branch
        %723 = sbr.rel (%p721) target = $region44
      $region43: #{tpu_custom_call.1} parent=39 // pred_region
        %s724 = smul.u32 16, %s16
      $region44: #{tpu_custom_call.1} parent=39 // pred_fallthru
        _
    $region40: #{tpu_custom_call.1} parent=5 // pred_fallthru
      _
    %p725 = scmp.le.s32.totalorder 2, %s11
    // Predicated region
    $region45: #{tpu_custom_call.1} parent=5 // pred_check
      %p726 = pneg %p725
    $region46: #{tpu_custom_call.1} parent=5 // pred_check_branch
      %728 = sbr.rel (%p726) target = $region48
    $region47: #{tpu_custom_call.1} parent=5 // pred_region
      %s729 = ssub.s32 %s11, 2
      // Predicated region
      $region49: #{tpu_custom_call.1} parent=47 // pred_check
        %p730 = pneg %p150
      $region50: #{tpu_custom_call.1} parent=47 // pred_check_branch
        %732 = sbr.rel (%p730) target = $region52
      $region51: #{tpu_custom_call.1} parent=47 // pred_region
        %s733 = smul.u32 16, %s17
        %p734 = scmp.lt.s32.totalorder %s733, 31
        %s735 = scalar_select %p734, %s733, 31
        %s736 = smul.addr %s735, 8
        %s737 = scalar_lea.vmem %s5, %s736
      $region52: #{tpu_custom_call.1} parent=47 // pred_fallthru
        _
    $region48: #{tpu_custom_call.1} parent=5 // pred_fallthru
      _
  $region6: #{tpu_custom_call.1} parent=0 // loop_footer
    %s15 = sadd.s32 1, %s11
  $region7: #{tpu_custom_call.1} parent=0 // loop_footer_branch
    %10 = sbr.rel target = $region3
  $region8: #{tpu_custom_call.1} parent=0 // loop_exit
    _

</llo_original>
